<compile_context>
chip_gen: v5e
topology: v5e:2x2
jax: 0.10.0
libtpu: 0.0.40
codegen_flags: <defaults>
</compile_context>

<pallas_src>
import functools
import math

import jax
import jax.numpy as jnp
import numpy as np
from jax import lax
from jax.experimental import pallas as pl
from jax.experimental.pallas import tpu as pltpu


def _round_up(x, m):
    return ((x + m - 1) // m) * m


def _gaussian_window_floats(size, sigma):
    """Gaussian taps as plain Python floats (baked into the band matrix)."""
    center = size // 2
    vals = [math.exp(-((i - center) ** 2) / (2.0 * sigma * sigma))
            for i in range(size)]
    s = sum(vals)
    return tuple(v / s for v in vals)


def _band_matrix(w, window_size, win):
    """(W, W) f32 band matrix with the zero-padded 1-D conv baked in.

    out[j] = sum_k win[k] * x[j + k - pad]   (x == 0 outside [0, W))
           = (x @ B)[j]    with    B[j + k - pad, j] = win[k].
    """
    pad = window_size // 2
    b = np.zeros((w, w), dtype=np.float32)
    for j in range(w):
        for k in range(window_size):
            i = j + k - pad
            if 0 <= i < w:
                b[i, j] = win[k]
    return jnp.asarray(b)


def _plan_tiles(r, w, itemsize):
    """Row-tile size, grid length and scoped-VMEM limit per TPU generation."""
    try:
        vmem_cap = int(pltpu.get_tpu_info().vmem_capacity_bytes)
    except Exception:  # interpret mode / older runtimes
        vmem_cap = 64 * 1024 * 1024   # v7x per-core physical VMEM (smallest)

    band_bytes = 2 * w * w * 4        # resident band matrix (x2 buffers)
    # Per-row working set: 2 inputs x 2 pipeline buffers (native dtype), f32
    # upcast copies, the stacked 5-slab matmul operand + result, ~10 SSIM
    # temporaries — all of width W.
    per_row = w * (2 * 2 * itemsize + 4 * (2 + 5 + 5 + 10))
    budget = int(0.40 * vmem_cap)     # leave headroom for spills / pipelining
    tile_r = (budget - band_bytes) // max(per_row, 1)
    tile_r = max(16, min(1024, (tile_r // 16) * 16))
    # Keep >= ~8 grid blocks: v7x megacore needs >= 2 blocks to use both
    # TensorCores, and pipelining needs > 1 block to overlap DMA with compute.
    tile_r = min(tile_r, max(16, _round_up(pl.cdiv(r, 8), 16)))
    tile_r = min(tile_r, _round_up(r, 16))
    num_blocks = pl.cdiv(r, tile_r)
    footprint = band_bytes + tile_r * per_row
    vmem_limit = int(min(max(footprint * 1.4, 32 * 1024 * 1024),
                         0.9 * vmem_cap))
    return tile_r, num_blocks, vmem_limit


def _ssim_partial_kernel(x_ref, y_ref, band_ref, out_ref, *, tile_r, w,
                         r_valid, ragged, c1, c2):
    """Per-block partial sum of the interior SSIM map.

    x_ref, y_ref: (tile_r, W) tiles of pred/target rows (native dtype).
    band_ref:     (W, W) f32 Gaussian band matrix (VMEM-resident).
    out_ref:      (1, 1, 128) f32; the block's partial sum broadcast into it.
    """
    xp = x_ref[...].astype(jnp.float32)
    yp = y_ref[...].astype(jnp.float32)

    # One MXU matmul convolves all five slabs at once (amortizes MXU weight
    # loads); the band matrix encodes the zero-padded 1-D Gaussian conv along
    # W.  HIGHEST precision keeps full f32 accuracy for the E[x^2] - mu^2
    # cancellation below.
    stacked = jnp.concatenate([xp, yp, xp * xp, yp * yp, xp * yp], axis=0)
    conv = jnp.dot(stacked, band_ref[...],
                   preferred_element_type=jnp.float32,
                   precision=lax.Precision.HIGHEST)

    mu1 = conv[0 * tile_r:1 * tile_r]
    mu2 = conv[1 * tile_r:2 * tile_r]
    exx = conv[2 * tile_r:3 * tile_r]
    eyy = conv[3 * tile_r:4 * tile_r]
    exy = conv[4 * tile_r:5 * tile_r]

    mu1_sq = mu1 * mu1
    mu2_sq = mu2 * mu2
    mu1_mu2 = mu1 * mu2
    sigma1_sq = exx - mu1_sq
    sigma2_sq = eyy - mu2_sq
    sigma12 = exy - mu1_mu2

    num = (2.0 * mu1_mu2 + c1) * (2.0 * sigma12 + c2)
    den = (mu1_sq + mu2_sq + c1) * (sigma1_sq + sigma2_sq + c2)

    # EUP approx reciprocal + one Newton step (den >= c1*c2 > 0).
    r0 = pl.reciprocal(den, approx=True)
    ssim_map = num * (r0 * (2.0 - den * r0))

    if not ragged:
        # Row count divides evenly: every element of every block is valid, no
        # masking anywhere.
        out_ref[...] = jnp.full(out_ref.shape, jnp.sum(ssim_map), jnp.float32)
    else:
        i = pl.program_id(0)
        last = pl.num_programs(0) - 1

        @pl.when(i != last)
        def _():
            out_ref[...] = jnp.full(out_ref.shape, jnp.sum(ssim_map),
                                    jnp.float32)

        @pl.when(i == last)
        def _():
            # Only the ragged last block pays for the row mask; its trailing
            # rows hold unspecified data and `where` keeps any NaN/Inf they
            # produce out of the sum.
            rows = lax.broadcasted_iota(jnp.int32, (tile_r, w), 0)
            valid = r_valid - i * tile_r
            masked = jnp.where(rows < valid, ssim_map, 0.0)
            out_ref[...] = jnp.full(out_ref.shape, jnp.sum(masked),
                                    jnp.float32)


def ssim_loss_pallas(pred, target, *, window_size=11, window_sigma=1.5,
                     size_average=True, loss_weight=1.0):
    """weight * (1 - ssim(pred, target)); pred/target are NCHW arrays."""
    assert size_average, "size_average=False not implemented"
    # TODO(synk): size_average=False (per-sample means) would need per-sample
    # partial sums from the kernel; module default (True) is implemented.
    assert pred.shape == target.shape
    n, c, h, w = pred.shape
    pad = window_size // 2
    c1 = 0.01 ** 2
    c2 = 0.03 ** 2

    win = _gaussian_window_floats(window_size, window_sigma)
    band = _band_matrix(w, window_size, win)
    # TODO(synk): for very large W (>~2048) the (W, W) band matrix should be
    # width-tiled (2-D grid, (tile_w + ws - 1, tile_w) band slab) to keep the
    # MXU work O(tile_w) per element and the band in VMEM.

    r = n * c * h
    itemsize = jnp.dtype(pred.dtype).itemsize
    tile_r, num_blocks, vmem_limit = _plan_tiles(r, w, itemsize)
    ragged = (num_blocks * tile_r) != r

    # No host-side pad / upcast: DMA the raw (R, W) rows at their native
    # dtype; the W halo lives in the band matrix, upcast happens in-kernel.
    x2d = pred.reshape(r, w)
    y2d = target.reshape(r, w)

    kernel = functools.partial(
        _ssim_partial_kernel, tile_r=tile_r, w=w, r_valid=r, ragged=ragged,
        c1=c1, c2=c2)

    cost = pl.CostEstimate(
        flops=10 * r * w * w + 40 * r * w,
        transcendentals=r * w,
        bytes_accessed=2 * r * w * itemsize + 4 * w * w + 512 * num_blocks)

    partials = pl.pallas_call(
        kernel,
        out_shape=jax.ShapeDtypeStruct((num_blocks, 1, 128), jnp.float32),
        grid=(num_blocks,),
        in_specs=[
            pl.BlockSpec((tile_r, w), lambda i: (i, 0)),   # pred rows
            pl.BlockSpec((tile_r, w), lambda i: (i, 0)),   # target rows
            pl.BlockSpec((w, w), lambda i: (0, 0)),        # band (resident)
        ],
        out_specs=pl.BlockSpec((1, 1, 128), lambda i: (i, 0, 0)),
        compiler_params=pltpu.CompilerParams(
            dimension_semantics=("parallel",),
            vmem_limit_bytes=vmem_limit),
        cost_estimate=cost,
    )(x2d, y2d, band)

    interior_sum = jnp.sum(partials[:, 0, 0])

    # F.conv2d with a (1, ws) kernel and padding=pad yields spatial output
    # (H + 2*pad, W); the 2*pad border rows have ssim == 1 exactly.
    total_elems = n * c * (h + 2 * pad) * w
    border_elems = n * c * (2 * pad) * w
    mean_ssim = (interior_sum + border_elems) / total_elems
    return loss_weight * (1.0 - mean_ssim)


def ssim_loss_reference(pred, target, *, window_size=11, window_sigma=1.5,
                        loss_weight=1.0):
    """Pure-JAX transcription of the PyTorch module (for verification)."""
    c = pred.shape[1]
    pad = window_size // 2
    coords = jnp.arange(window_size, dtype=jnp.float32) - (window_size // 2)
    g = jnp.exp(-(coords ** 2) / (2.0 * window_sigma ** 2))
    g = g / jnp.sum(g)
    win = jnp.tile(g.reshape(1, 1, 1, window_size), (c, 1, 1, 1))

    def conv(x):
        return lax.conv_general_dilated(
            x, win, window_strides=(1, 1),
            padding=((pad, pad), (pad, pad)),
            dimension_numbers=('NCHW', 'OIHW', 'NCHW'),
            feature_group_count=c,
            precision=lax.Precision.HIGHEST)

    mu1 = conv(pred)
    mu2 = conv(target)
    mu1_sq = mu1 ** 2
    mu2_sq = mu2 ** 2
    mu1_mu2 = mu1 * mu2
    sigma1_sq = conv(pred * pred) - mu1_sq
    sigma2_sq = conv(target * target) - mu2_sq
    sigma12 = conv(pred * target) - mu1_mu2
    c1_ = 0.01 ** 2
    c2_ = 0.03 ** 2
    ssim_map = ((2 * mu1_mu2 + c1_) * (2 * sigma12 + c2_) /
                ((mu1_sq + mu2_sq + c1_) * (sigma1_sq + sigma2_sq + c2_)))
    return loss_weight * (1.0 - jnp.mean(ssim_map))


if __name__ == "__main__":
    key = jax.random.PRNGKey(0)
    k1, k2 = jax.random.split(key)
    # Small NCHW inputs consistent with the module's forward.
    pred = jax.random.uniform(k1, (2, 4, 16, 16), dtype=jnp.float32)
    target = jax.random.uniform(k2, (2, 4, 16, 16), dtype=jnp.float32)

    loss = ssim_loss_pallas(pred, target, window_size=11, window_sigma=1.5,
                            size_average=True, loss_weight=1.0)
    loss = jax.block_until_ready(loss)

    ref = jax.block_until_ready(ssim_loss_reference(pred, target))
    assert jnp.allclose(loss, ref, rtol=1e-4, atol=1e-5), (loss, ref)
    print("KERNEL_OK")
</pallas_src>

<mosaic_0001>
module attributes {stable_mosaic.version = 11 : i64} {
  func.func @_ssim_partial_kernel(%arg0: i32, %arg1: memref<16x16xf32, #tpu.memory_space<vmem>>, %arg2: memref<16x16xf32, #tpu.memory_space<vmem>>, %arg3: memref<16x16xf32, #tpu.memory_space<vmem>>, %arg4: memref<1x1x128xf32, #tpu.memory_space<vmem>>) attributes {dimension_semantics = [#tpu.dimension_semantics<parallel>], iteration_bounds = array<i64: 8>, scalar_prefetch = 0 : i64, scratch_operands = 0 : i64, tpu.core_type = #tpu.core_type<tc>, window_params = [{transform_indices = @transform_0, window_bounds = array<i64: 16, 16>}, {transform_indices = @transform_1, window_bounds = array<i64: 16, 16>}, {pipeline_mode = #tpu.pipeline_mode<synchronous>, transform_indices = @transform_2, window_bounds = array<i64: 16, 16>}, {transform_indices = @transform_3, window_bounds = array<i64: 1, 1, 128>}]} {
    %c0 = arith.constant 0 : index
    %c0_0 = arith.constant 0 : index
    %0 = vector.load %arg1[%c0, %c0_0] : memref<16x16xf32, #tpu.memory_space<vmem>>, vector<16x16xf32>
    %c0_1 = arith.constant 0 : index
    %c0_2 = arith.constant 0 : index
    %1 = vector.load %arg2[%c0_1, %c0_2] : memref<16x16xf32, #tpu.memory_space<vmem>>, vector<16x16xf32>
    %2 = arith.mulf %0, %0 : vector<16x16xf32>
    %3 = arith.mulf %1, %1 : vector<16x16xf32>
    %4 = arith.mulf %0, %1 : vector<16x16xf32>
    %5 = tpu.concatenate %0, %1, %2, %3, %4 in 0 : vector<16x16xf32>, vector<16x16xf32>, vector<16x16xf32>, vector<16x16xf32>, vector<16x16xf32> -> vector<80x16xf32>
    %c0_3 = arith.constant 0 : index
    %c0_4 = arith.constant 0 : index
    %6 = vector.load %arg3[%c0_3, %c0_4] : memref<16x16xf32, #tpu.memory_space<vmem>>, vector<16x16xf32>
    %cst = arith.constant dense<0.000000e+00> : vector<80x16xf32>
    %7 = tpu.matmul %5, %6, %cst {dimension_numbers = #tpu.dot_dimension_numbers<[1], [0], [0], [1], [0, 0, 1, 1], [], []>, precision = #tpu.contract_precision<fp32>} : vector<80x16xf32>, vector<16x16xf32>, vector<80x16xf32> -> vector<80x16xf32>
    %8 = vector.extract_strided_slice %7 {offsets = [0, 0], sizes = [16, 16], strides = [1, 1]} : vector<80x16xf32> to vector<16x16xf32>
    %9 = vector.extract_strided_slice %7 {offsets = [16, 0], sizes = [16, 16], strides = [1, 1]} : vector<80x16xf32> to vector<16x16xf32>
    %10 = vector.extract_strided_slice %7 {offsets = [32, 0], sizes = [16, 16], strides = [1, 1]} : vector<80x16xf32> to vector<16x16xf32>
    %11 = vector.extract_strided_slice %7 {offsets = [48, 0], sizes = [16, 16], strides = [1, 1]} : vector<80x16xf32> to vector<16x16xf32>
    %12 = vector.extract_strided_slice %7 {offsets = [64, 0], sizes = [16, 16], strides = [1, 1]} : vector<80x16xf32> to vector<16x16xf32>
    %13 = arith.mulf %8, %8 : vector<16x16xf32>
    %14 = arith.mulf %9, %9 : vector<16x16xf32>
    %15 = arith.mulf %8, %9 : vector<16x16xf32>
    %16 = arith.subf %10, %13 : vector<16x16xf32>
    %17 = arith.subf %11, %14 : vector<16x16xf32>
    %18 = arith.subf %12, %15 : vector<16x16xf32>
    %cst_5 = arith.constant 2.000000e+00 : f32
    %19 = vector.broadcast %cst_5 : f32 to vector<16x16xf32>
    %20 = arith.mulf %19, %15 : vector<16x16xf32>
    %cst_6 = arith.constant 9.99999974E-5 : f32
    %21 = vector.broadcast %cst_6 : f32 to vector<16x16xf32>
    %22 = arith.addf %20, %21 : vector<16x16xf32>
    %cst_7 = arith.constant 2.000000e+00 : f32
    %23 = vector.broadcast %cst_7 : f32 to vector<16x16xf32>
    %24 = arith.mulf %23, %18 : vector<16x16xf32>
    %cst_8 = arith.constant 8.99999984E-4 : f32
    %25 = vector.broadcast %cst_8 : f32 to vector<16x16xf32>
    %26 = arith.addf %24, %25 : vector<16x16xf32>
    %27 = arith.mulf %22, %26 : vector<16x16xf32>
    %28 = arith.addf %13, %14 : vector<16x16xf32>
    %cst_9 = arith.constant 9.99999974E-5 : f32
    %29 = vector.broadcast %cst_9 : f32 to vector<16x16xf32>
    %30 = arith.addf %28, %29 : vector<16x16xf32>
    %31 = arith.addf %16, %17 : vector<16x16xf32>
    %cst_10 = arith.constant 8.99999984E-4 : f32
    %32 = vector.broadcast %cst_10 : f32 to vector<16x16xf32>
    %33 = arith.addf %31, %32 : vector<16x16xf32>
    %34 = arith.mulf %30, %33 : vector<16x16xf32>
    %35 = tpu.reciprocal %34 {approx = true} : vector<16x16xf32> -> vector<16x16xf32>
    %36 = arith.mulf %34, %35 : vector<16x16xf32>
    %cst_11 = arith.constant 2.000000e+00 : f32
    %37 = vector.broadcast %cst_11 : f32 to vector<16x16xf32>
    %38 = arith.subf %37, %36 : vector<16x16xf32>
    %39 = arith.mulf %35, %38 : vector<16x16xf32>
    %40 = arith.mulf %27, %39 : vector<16x16xf32>
    %41 = vector.shape_cast %40 : vector<16x16xf32> to vector<1x16x16xf32>
    %cst_12 = arith.constant dense<0.000000e+00> : vector<1xf32>
    %42 = vector.multi_reduction <add>, %41, %cst_12 [1, 2] : vector<1x16x16xf32> to vector<1xf32>
    %43 = vector.shape_cast %42 : vector<1xf32> to vector<1x1x1xf32>
    %44 = vector.extract %43[0, 0, 0] : f32 from vector<1x1x1xf32>
    %45 = vector.broadcast %44 : f32 to vector<1x1x128xf32>
    %c0_13 = arith.constant 0 : index
    %c0_14 = arith.constant 0 : index
    %c0_15 = arith.constant 0 : index
    %46 = vector.load %arg4[%c0_13, %c0_14, %c0_15] : memref<1x1x128xf32, #tpu.memory_space<vmem>>, vector<1x1x128xf32>
    tpu.vector_store %arg4[%c0_13, %c0_14, %c0_15], %45 {strides = array<i32>} : memref<1x1x128xf32, #tpu.memory_space<vmem>>, vector<1x1x128xf32>,
    return
  }
  func.func @transform_0(%arg0: i32) -> (i32, i32) {
    %c0_i32 = arith.constant 0 : i32
    %c0_i32_0 = arith.constant 0 : i32
    return %arg0, %c0_i32 : i32, i32
  }
  func.func @transform_1(%arg0: i32) -> (i32, i32) {
    %c0_i32 = arith.constant 0 : i32
    %c0_i32_0 = arith.constant 0 : i32
    return %arg0, %c0_i32 : i32, i32
  }
  func.func @transform_2(%arg0: i32) -> (i32, i32) {
    %c0_i32 = arith.constant 0 : i32
    %c0_i32_0 = arith.constant 0 : i32
    %c0_i32_1 = arith.constant 0 : i32
    return %c0_i32, %c0_i32_0 : i32, i32
  }
  func.func @transform_3(%arg0: i32) -> (i32, i32, i32) {
    %c0_i32 = arith.constant 0 : i32
    %c0_i32_0 = arith.constant 0 : i32
    %c0_i32_1 = arith.constant 0 : i32
    return %arg0, %c0_i32, %c0_i32_0 : i32, i32, i32
  }
}

</mosaic_0001>

<llo_original>
// kernel: tpu_custom_call.1
$region0: #{tpu_custom_call.1}
  #allocation0 [shape = 'u32[]', space=smem, size = 0x4, offset = 0x4, fixed_abs, tag = 'smem constant byte address 0x4 - core index']
  #allocation1 [shape = 'u32[72,128]{1,0:T(1,128)}', space=vmem, size = 0x9000, scoped, tag = 'internal scratch']
  %s0 = inlined_call_operand.vmem [shape: f32[128,16], index: 0, kind: input, shape index: {}]
  %s1 = inlined_call_operand.vmem [shape: f32[128,16], index: 1, kind: input, shape index: {}]
  %s2 = inlined_call_operand.vmem [shape: f32[16,16], index: 2, kind: input, shape index: {}]
  %s3 = inlined_call_operand.hbm [shape: f32[8,1,128], index: 3, kind: output, shape index: {}]
  %s4 = sld [smem:[#allocation0]]
  $region45: #{tpu_custom_call.1} parent=0
    _
  %s6 = ssub.s32 1, %s4
  %s7 = scalar_select 0, %s6, %s4
  $region1: #{tpu_custom_call.1} parent=0
    #allocation2 [shape = 'u8[1024]{0}', space=vmem, size = 0x400, scoped, tag = 'output window, operand 0']
    #allocation3 [shape = 's32[2]{0}', space=sflag, size = 0x8, scoped, tag = 'scoped memory for tpu_custom_call.1']
    %8 = vsyncpa [#allocation3], 0
    %s9 = scalar_lea.sflag [#allocation3], 1
    %10 = vsyncpa %s9, 0
    loop: start=0, step=1, limit=10
    $region2: #{tpu_custom_call.1} parent=1 // loop_pre_header
      _
    $region3: #{tpu_custom_call.1} parent=1 // loop_header
      %s12 = sphi 0, %s16
      %p13 = scmp.ge.s32.totalorder %s12, 10
      %s22 = sphi 0, %s24
      %s25 = sphi 0, %s22
      %s26 = sphi 0, %s25
      %s42 = sphi 0, %s26
      %s48 = sphi 0, %s50
      %s51 = sphi 0, %s48
      %s52 = sphi 0, %s51
      %s68 = sphi 0, %s52
      %s72 = sphi 0, %s72
      %s74 = sphi 0, %s72
      %s75 = sphi 0, %s74
      %s89 = sphi 0, %s75
      %s95 = sphi 0, %s97
      %s98 = sphi 0, %s95
      %s99 = sphi 0, %s98
      %s115 = sphi 0, %s99
    $region4: #{tpu_custom_call.1} parent=1 // loop_header_branch
      %15 = sbr.rel (%p13) target = $region8
    $region5: #{tpu_custom_call.1} parent=1 // loop_body
      %s17 = ssub.s32 %s12, 1
      %s18 = ssub.s32 %s12, 2
      %s19 = sadd.s32 %s12, 1
      %s20 = ssub.s32 %s12, %s19
      %p21 = scmp.eq.s32.totalorder %s20, 0
      %s23 = sadd.s32 %s22, 1
      %s24 = scalar_select %p21, %s22, %s23
      %p27 = pneg %p21
      %p28 = scmp.eq.s32.totalorder %s12, 7
      %p29 = por %p27, %p28
      %p30 = scmp.ne.s32.totalorder %s22, %s25
      %p31 = scmp.eq.s32.totalorder %s12, 0
      %p32 = por %p30, %p31
      %p33 = scmp.ne.s32.totalorder %s22, %s25
      %p34 = scmp.eq.s32.totalorder %s17, 7
      %p35 = por %p33, %p34
      %p36 = scmp.ne.s32.totalorder %s25, %s26
      %p37 = scmp.eq.s32.totalorder %s17, 0
      %p38 = por %p36, %p37
      %p39 = scmp.ne.s32.totalorder %s25, %s26
      %p40 = scmp.eq.s32.totalorder %s18, 7
      %p41 = por %p39, %p40
      %p43 = scmp.ne.s32.totalorder %s26, %s42
      %p44 = scmp.eq.s32.totalorder %s18, 0
      %p45 = por %p43, %p44
      %s46 = ssub.s32 %s12, %s19
      %p47 = scmp.eq.s32.totalorder %s46, 0
      %s49 = sadd.s32 %s48, 1
      %s50 = scalar_select %p47, %s48, %s49
      %p53 = pneg %p47
      %p54 = scmp.eq.s32.totalorder %s12, 7
      %p55 = por %p53, %p54
      %p56 = scmp.ne.s32.totalorder %s48, %s51
      %p57 = scmp.eq.s32.totalorder %s12, 0
      %p58 = por %p56, %p57
      %p59 = scmp.ne.s32.totalorder %s48, %s51
      %p60 = scmp.eq.s32.totalorder %s17, 7
      %p61 = por %p59, %p60
      %p62 = scmp.ne.s32.totalorder %s51, %s52
      %p63 = scmp.eq.s32.totalorder %s17, 0
      %p64 = por %p62, %p63
      %p65 = scmp.ne.s32.totalorder %s51, %s52
      %p66 = scmp.eq.s32.totalorder %s18, 7
      %p67 = por %p65, %p66
      %p69 = scmp.ne.s32.totalorder %s52, %s68
      %p70 = scmp.eq.s32.totalorder %s18, 0
      %p71 = por %p69, %p70
      %s73 = sadd.s32 %s72, 1
      %p76 = scmp.eq.s32.totalorder %s12, 7
      %p77 = scmp.ne.s32.totalorder %s72, %s74
      %p78 = scmp.eq.s32.totalorder %s12, 0
      %p79 = por %p77, %p78
      %p80 = scmp.ne.s32.totalorder %s72, %s74
      %p81 = scmp.eq.s32.totalorder %s17, 7
      %p82 = por %p80, %p81
      %p83 = scmp.ne.s32.totalorder %s74, %s75
      %p84 = scmp.eq.s32.totalorder %s17, 0
      %p85 = por %p83, %p84
      %p86 = scmp.ne.s32.totalorder %s74, %s75
      %p87 = scmp.eq.s32.totalorder %s18, 7
      %p88 = por %p86, %p87
      %p90 = scmp.ne.s32.totalorder %s75, %s89
      %p91 = scmp.eq.s32.totalorder %s18, 0
      %p92 = por %p90, %p91
      %s93 = ssub.s32 %s12, %s19
      %p94 = scmp.eq.s32.totalorder %s93, 0
      %s96 = sadd.s32 %s95, 1
      %s97 = scalar_select %p94, %s95, %s96
      %p100 = pneg %p94
      %p101 = scmp.eq.s32.totalorder %s12, 7
      %p102 = por %p100, %p101
      %p103 = scmp.ne.s32.totalorder %s95, %s98
      %p104 = scmp.eq.s32.totalorder %s12, 0
      %p105 = por %p103, %p104
      %p106 = scmp.ne.s32.totalorder %s95, %s98
      %p107 = scmp.eq.s32.totalorder %s17, 7
      %p108 = por %p106, %p107
      %p109 = scmp.ne.s32.totalorder %s98, %s99
      %p110 = scmp.eq.s32.totalorder %s17, 0
      %p111 = por %p109, %p110
      %p112 = scmp.ne.s32.totalorder %s98, %s99
      %p113 = scmp.eq.s32.totalorder %s18, 7
      %p114 = por %p112, %p113
      %p116 = scmp.ne.s32.totalorder %s99, %s115
      %p117 = scmp.eq.s32.totalorder %s18, 0
      %p118 = por %p116, %p117
      %p119 = scmp.le.s32.totalorder 1, %s12
      %p120 = scmp.lt.s32.totalorder %s12, 9
      %p121 = pnand %p119, %p120
      %p122 = pneg %p121
      // Predicated region
      $region9: #{tpu_custom_call.1} parent=5 // pred_check
        _
      $region10: #{tpu_custom_call.1} parent=5 // pred_check_branch
        %124 = sbr.rel (%p121) target = $region12
      $region11: #{tpu_custom_call.1} parent=5 // pred_region
        %s125 = ssub.s32 %s12, 1
        // Predicated region
        $region13: #{tpu_custom_call.1} parent=11 // pred_check
          %p126 = pneg %p85
        $region14: #{tpu_custom_call.1} parent=11 // pred_check_branch
          %128 = sbr.rel (%p126) target = $region16
        $region15: #{tpu_custom_call.1} parent=11 // pred_region
          _
        $region16: #{tpu_custom_call.1} parent=11 // pred_fallthru
          _
      $region12: #{tpu_custom_call.1} parent=5 // pred_fallthru
        _
      %p129 = scmp.lt.s32.totalorder %s12, 8
      // Predicated region
      $region17: #{tpu_custom_call.1} parent=5 // pred_check
        %p130 = pneg %p129
      $region18: #{tpu_custom_call.1} parent=5 // pred_check_branch
        %132 = sbr.rel (%p130) target = $region20
      $region19: #{tpu_custom_call.1} parent=5 // pred_region
        // Predicated region
        $region21: #{tpu_custom_call.1} parent=19 // pred_check
          %p133 = pneg %p32
        $region22: #{tpu_custom_call.1} parent=19 // pred_check_branch
          %135 = sbr.rel (%p133) target = $region24
        $region23: #{tpu_custom_call.1} parent=19 // pred_region
          %s136 = smul.u32 2, %s12
          %p137 = scmp.lt.s32.totalorder %s136, 15
          %s138 = scalar_select %p137, %s136, 15
          %s139 = smul.addr %s138, 8
          %s140 = scalar_lea.vmem %s0, %s139
          %s141 = smul.u32 2, %s12
        $region24: #{tpu_custom_call.1} parent=19 // pred_fallthru
          _
        // Predicated region
        $region25: #{tpu_custom_call.1} parent=19 // pred_check
          %p142 = pneg %p58
        $region26: #{tpu_custom_call.1} parent=19 // pred_check_branch
          %144 = sbr.rel (%p142) target = $region28
        $region27: #{tpu_custom_call.1} parent=19 // pred_region
          %s145 = smul.u32 2, %s12
          %p146 = scmp.lt.s32.totalorder %s145, 15
          %s147 = scalar_select %p146, %s145, 15
          %s148 = smul.addr %s147, 8
          %s149 = scalar_lea.vmem %s1, %s148
          %s150 = smul.u32 2, %s12
        $region28: #{tpu_custom_call.1} parent=19 // pred_fallthru
          _
      $region20: #{tpu_custom_call.1} parent=5 // pred_fallthru
        _
      %p151 = scmp.le.s32.totalorder 1, %s12
      %p152 = scmp.lt.s32.totalorder %s12, 9
      %p153 = pnand %p151, %p152
      %p154 = pneg %p153
      // Predicated region
      $region29: #{tpu_custom_call.1} parent=5 // pred_check
        _
      $region30: #{tpu_custom_call.1} parent=5 // pred_check_branch
        %156 = sbr.rel (%p153) target = $region32
      $region31: #{tpu_custom_call.1} parent=5 // pred_region
        %s157 = ssub.s32 %s12, 1
        %s158 = smul.u32 2, %s17
        %p159 = scmp.lt.s32.totalorder %s158, 15
        %s160 = scalar_select %p159, %s158, 15
        %s161 = smul.addr %s160, 8
        %s162 = scalar_lea.vmem %s0, %s161
        %p163 = pneg %p38
        %p164 = pneg %p35
        %s165 = smul.u32 2, %s17
        %p166 = scmp.lt.s32.totalorder %s165, 15
        %s167 = scalar_select %p166, %s165, 15
        %s168 = smul.addr %s167, 8
        %s169 = scalar_lea.vmem %s1, %s168
        %p170 = pneg %p64
        %p171 = pneg %p61
        %p172 = pneg %p85
        %p173 = pneg %p82
        %p174 = pneg %p111
        %p175 = pneg %p108
        %s176 = sand.u32 %s98, 1
        %s177 = scalar_lea.sflag [#allocation3], %s176
        %s178 = sand.u32 %s98, 1
        %s179 = scalar_lea.vmem [#allocation2], %s178
        %s180 = smul.u32 2, %s17
        %p181 = scmp.lt.s32.totalorder %s180, 15
        %s182 = scalar_select %p181, %s180, 15
        %s183 = smul.addr %s182, 8
        %s184 = scalar_lea.vmem %s0, %s183
        %s185 = smul.u32 2, %s17
        %s186 = smul.u32 2, %s17
        %p187 = scmp.lt.s32.totalorder %s186, 15
        %s188 = scalar_select %p187, %s186, 15
        %s189 = smul.addr %s188, 8
        %s190 = scalar_lea.vmem %s1, %s189
        %s191 = smul.u32 2, %s17
        %v192 = vld [vmem:[%s184] sm:$0xff]
        %v193 = vld [vmem:[%s184 + $0x8] sm:$0xff]
        %v194 = vld [vmem:[%s190] sm:$0xff]
        %v195 = vld [vmem:[%s190 + $0x8] sm:$0xff]
        %v196 = vmul.f32 %v192, %v192
        %v197 = vmul.f32 %v193, %v193
        %v198 = vmul.f32 %v194, %v194
        %v199 = vmul.f32 %v195, %v195
        %v200 = vmul.f32 %v192, %v194
        %v201 = vmul.f32 %v193, %v195
        %v202 = vld [vmem:[%s2] sm:$0xff]
        %v203 = vld [vmem:[%s2 + $0x8] sm:$0xff]
        %vm204 = vcmask 130048
        %v206 = vsel %vm204, %v192, 0
        %v209 = vsel %vm204, %v193, 0
        %v212 = vsel %vm204, %v194, 0
        %v215 = vsel %vm204, %v195, 0
        %v218 = vsel %vm204, %v196, 0
        %v221 = vsel %vm204, %v197, 0
        %v224 = vsel %vm204, %v198, 0
        %v227 = vsel %vm204, %v199, 0
        %v230 = vsel %vm204, %v200, 0
        %v233 = vsel %vm204, %v201, 0
        %235 = vmatpush.msra.mxu0 0.0
        %236 = vmatpush.msra.mxu0 0.0
        %237 = vmatpush.msra.mxu0 0.0
        %238 = vmatpush.msra.mxu0 0.0
        %239 = vmatpush.msra.mxu0 0.0
        %240 = vmatpush.msra.mxu0 0.0
        %241 = vmatpush.msra.mxu0 0.0
        %242 = vmatpush.msra.mxu0 0.0
        %243 = vmatpush.msra.mxu0 0.0
        %244 = vmatpush.msra.mxu0 0.0
        %245 = vmatpush.msra.mxu0 0.0
        %246 = vmatpush.msra.mxu0 0.0
        %247 = vmatpush.msra.mxu0 0.0
        %248 = vmatpush.msra.mxu0 0.0
        %v249 = vand.u32 %v203, 4294901760
        %250 = vmatpush.msra.mxu0 %v249
        %v251 = vand.u32 %v202, 4294901760
        %252 = vmatpush.msra.mxu0 %v251
        %v253 = vand.u32 %v206, 4294901760
        %v254 = vsub.f32 %v206, %v253
        %v255 = vand.u32 %v254, 4294901760
        %v256 = vsub.f32 %v254, %v255
        %v257 = vand.u32 %v256, 4294901760
        %258 = vmatmul.f32.gmra.mxu0 %v257
        %v259 = vpop.f32.mrf.mxu0
        %v260 = vadd.f32 0.0, %v259
        %v261 = vand.u32 %v209, 4294901760
        %v262 = vsub.f32 %v209, %v261
        %v263 = vand.u32 %v262, 4294901760
        %v264 = vsub.f32 %v262, %v263
        %v265 = vand.u32 %v264, 4294901760
        %266 = vmatmul.f32.gmra.mxu0 %v265
        %v267 = vpop.f32.mrf.mxu0
        %v268 = vadd.f32 0.0, %v267
        %v269 = vand.u32 %v212, 4294901760
        %v270 = vsub.f32 %v212, %v269
        %v271 = vand.u32 %v270, 4294901760
        %v272 = vsub.f32 %v270, %v271
        %v273 = vand.u32 %v272, 4294901760
        %274 = vmatmul.f32.gmra.mxu0 %v273
        %v275 = vpop.f32.mrf.mxu0
        %v276 = vadd.f32 0.0, %v275
        %v277 = vand.u32 %v215, 4294901760
        %v278 = vsub.f32 %v215, %v277
        %v279 = vand.u32 %v278, 4294901760
        %v280 = vsub.f32 %v278, %v279
        %v281 = vand.u32 %v280, 4294901760
        %282 = vmatmul.f32.gmra.mxu0 %v281
        %v283 = vpop.f32.mrf.mxu0
        %v284 = vadd.f32 0.0, %v283
        %v285 = vand.u32 %v218, 4294901760
        %v286 = vsub.f32 %v218, %v285
        %v287 = vand.u32 %v286, 4294901760
        %v288 = vsub.f32 %v286, %v287
        %v289 = vand.u32 %v288, 4294901760
        %290 = vmatmul.f32.gmra.mxu0 %v289
        %v291 = vpop.f32.mrf.mxu0
        %v292 = vadd.f32 0.0, %v291
        %v293 = vand.u32 %v221, 4294901760
        %v294 = vsub.f32 %v221, %v293
        %v295 = vand.u32 %v294, 4294901760
        %v296 = vsub.f32 %v294, %v295
        %v297 = vand.u32 %v296, 4294901760
        %298 = vmatmul.f32.gmra.mxu0 %v297
        %v299 = vpop.f32.mrf.mxu0
        %v300 = vadd.f32 0.0, %v299
        %v301 = vand.u32 %v224, 4294901760
        %v302 = vsub.f32 %v224, %v301
        %v303 = vand.u32 %v302, 4294901760
        %v304 = vsub.f32 %v302, %v303
        %v305 = vand.u32 %v304, 4294901760
        %306 = vmatmul.f32.gmra.mxu0 %v305
        %v307 = vpop.f32.mrf.mxu0
        %v308 = vadd.f32 0.0, %v307
        %v309 = vand.u32 %v227, 4294901760
        %v310 = vsub.f32 %v227, %v309
        %v311 = vand.u32 %v310, 4294901760
        %v312 = vsub.f32 %v310, %v311
        %v313 = vand.u32 %v312, 4294901760
        %314 = vmatmul.f32.gmra.mxu0 %v313
        %v315 = vpop.f32.mrf.mxu0
        %v316 = vadd.f32 0.0, %v315
        %v317 = vand.u32 %v230, 4294901760
        %v318 = vsub.f32 %v230, %v317
        %v319 = vand.u32 %v318, 4294901760
        %v320 = vsub.f32 %v318, %v319
        %v321 = vand.u32 %v320, 4294901760
        %322 = vmatmul.f32.gmra.mxu0 %v321
        %v323 = vpop.f32.mrf.mxu0
        %v324 = vadd.f32 0.0, %v323
        %v325 = vand.u32 %v233, 4294901760
        %v326 = vsub.f32 %v233, %v325
        %v327 = vand.u32 %v326, 4294901760
        %v328 = vsub.f32 %v326, %v327
        %v329 = vand.u32 %v328, 4294901760
        %330 = vmatmul.f32.gmra.mxu0 %v329
        %v331 = vpop.f32.mrf.mxu0
        %v332 = vadd.f32 0.0, %v331
        %333 = vdwg.mxu0
        %334 = vmatpush.msra.mxu0 0.0
        %335 = vmatpush.msra.mxu0 0.0
        %336 = vmatpush.msra.mxu0 0.0
        %337 = vmatpush.msra.mxu0 0.0
        %338 = vmatpush.msra.mxu0 0.0
        %339 = vmatpush.msra.mxu0 0.0
        %340 = vmatpush.msra.mxu0 0.0
        %341 = vmatpush.msra.mxu0 0.0
        %342 = vmatpush.msra.mxu0 0.0
        %343 = vmatpush.msra.mxu0 0.0
        %344 = vmatpush.msra.mxu0 0.0
        %345 = vmatpush.msra.mxu0 0.0
        %346 = vmatpush.msra.mxu0 0.0
        %347 = vmatpush.msra.mxu0 0.0
        %v348 = vand.u32 %v203, 4294901760
        %v349 = vsub.f32 %v203, %v348
        %v350 = vand.u32 %v349, 4294901760
        %v351 = vsub.f32 %v349, %v350
        %v352 = vand.u32 %v351, 4294901760
        %353 = vmatpush.msra.mxu0 %v352
        %v354 = vand.u32 %v202, 4294901760
        %v355 = vsub.f32 %v202, %v354
        %v356 = vand.u32 %v355, 4294901760
        %v357 = vsub.f32 %v355, %v356
        %v358 = vand.u32 %v357, 4294901760
        %359 = vmatpush.msra.mxu0 %v358
        %v360 = vand.u32 %v206, 4294901760
        %361 = vmatmul.f32.gmra.mxu0 %v360
        %v362 = vpop.f32.mrf.mxu0
        %v363 = vadd.f32 %v260, %v362
        %v364 = vand.u32 %v209, 4294901760
        %365 = vmatmul.f32.gmra.mxu0 %v364
        %v366 = vpop.f32.mrf.mxu0
        %v367 = vadd.f32 %v268, %v366
        %v368 = vand.u32 %v212, 4294901760
        %369 = vmatmul.f32.gmra.mxu0 %v368
        %v370 = vpop.f32.mrf.mxu0
        %v371 = vadd.f32 %v276, %v370
        %v372 = vand.u32 %v215, 4294901760
        %373 = vmatmul.f32.gmra.mxu0 %v372
        %v374 = vpop.f32.mrf.mxu0
        %v375 = vadd.f32 %v284, %v374
        %v376 = vand.u32 %v218, 4294901760
        %377 = vmatmul.f32.gmra.mxu0 %v376
        %v378 = vpop.f32.mrf.mxu0
        %v379 = vadd.f32 %v292, %v378
        %v380 = vand.u32 %v221, 4294901760
        %381 = vmatmul.f32.gmra.mxu0 %v380
        %v382 = vpop.f32.mrf.mxu0
        %v383 = vadd.f32 %v300, %v382
        %v384 = vand.u32 %v224, 4294901760
        %385 = vmatmul.f32.gmra.mxu0 %v384
        %v386 = vpop.f32.mrf.mxu0
        %v387 = vadd.f32 %v308, %v386
        %v388 = vand.u32 %v227, 4294901760
        %389 = vmatmul.f32.gmra.mxu0 %v388
        %v390 = vpop.f32.mrf.mxu0
        %v391 = vadd.f32 %v316, %v390
        %v392 = vand.u32 %v230, 4294901760
        %393 = vmatmul.f32.gmra.mxu0 %v392
        %v394 = vpop.f32.mrf.mxu0
        %v395 = vadd.f32 %v324, %v394
        %v396 = vand.u32 %v233, 4294901760
        %397 = vmatmul.f32.gmra.mxu0 %v396
        %v398 = vpop.f32.mrf.mxu0
        %v399 = vadd.f32 %v332, %v398
        %400 = vdwg.mxu0
        %401 = vmatpush.msra.mxu0 0.0
        %402 = vmatpush.msra.mxu0 0.0
        %403 = vmatpush.msra.mxu0 0.0
        %404 = vmatpush.msra.mxu0 0.0
        %405 = vmatpush.msra.mxu0 0.0
        %406 = vmatpush.msra.mxu0 0.0
        %407 = vmatpush.msra.mxu0 0.0
        %408 = vmatpush.msra.mxu0 0.0
        %409 = vmatpush.msra.mxu0 0.0
        %410 = vmatpush.msra.mxu0 0.0
        %411 = vmatpush.msra.mxu0 0.0
        %412 = vmatpush.msra.mxu0 0.0
        %413 = vmatpush.msra.mxu0 0.0
        %414 = vmatpush.msra.mxu0 0.0
        %v415 = vand.u32 %v203, 4294901760
        %v416 = vsub.f32 %v203, %v415
        %417 = vmatpush.msra.mxu0 %v416
        %v418 = vand.u32 %v202, 4294901760
        %v419 = vsub.f32 %v202, %v418
        %420 = vmatpush.msra.mxu0 %v419
        %v421 = vand.u32 %v206, 4294901760
        %v422 = vsub.f32 %v206, %v421
        %423 = vmatmul.f32.gmra.mxu0 %v422
        %v424 = vpop.f32.mrf.mxu0
        %v425 = vadd.f32 %v363, %v424
        %v426 = vand.u32 %v209, 4294901760
        %v427 = vsub.f32 %v209, %v426
        %428 = vmatmul.f32.gmra.mxu0 %v427
        %v429 = vpop.f32.mrf.mxu0
        %v430 = vadd.f32 %v367, %v429
        %v431 = vand.u32 %v212, 4294901760
        %v432 = vsub.f32 %v212, %v431
        %433 = vmatmul.f32.gmra.mxu0 %v432
        %v434 = vpop.f32.mrf.mxu0
        %v435 = vadd.f32 %v371, %v434
        %v436 = vand.u32 %v215, 4294901760
        %v437 = vsub.f32 %v215, %v436
        %438 = vmatmul.f32.gmra.mxu0 %v437
        %v439 = vpop.f32.mrf.mxu0
        %v440 = vadd.f32 %v375, %v439
        %v441 = vand.u32 %v218, 4294901760
        %v442 = vsub.f32 %v218, %v441
        %443 = vmatmul.f32.gmra.mxu0 %v442
        %v444 = vpop.f32.mrf.mxu0
        %v445 = vadd.f32 %v379, %v444
        %v446 = vand.u32 %v221, 4294901760
        %v447 = vsub.f32 %v221, %v446
        %448 = vmatmul.f32.gmra.mxu0 %v447
        %v449 = vpop.f32.mrf.mxu0
        %v450 = vadd.f32 %v383, %v449
        %v451 = vand.u32 %v224, 4294901760
        %v452 = vsub.f32 %v224, %v451
        %453 = vmatmul.f32.gmra.mxu0 %v452
        %v454 = vpop.f32.mrf.mxu0
        %v455 = vadd.f32 %v387, %v454
        %v456 = vand.u32 %v227, 4294901760
        %v457 = vsub.f32 %v227, %v456
        %458 = vmatmul.f32.gmra.mxu0 %v457
        %v459 = vpop.f32.mrf.mxu0
        %v460 = vadd.f32 %v391, %v459
        %v461 = vand.u32 %v230, 4294901760
        %v462 = vsub.f32 %v230, %v461
        %463 = vmatmul.f32.gmra.mxu0 %v462
        %v464 = vpop.f32.mrf.mxu0
        %v465 = vadd.f32 %v395, %v464
        %v466 = vand.u32 %v233, 4294901760
        %v467 = vsub.f32 %v233, %v466
        %468 = vmatmul.f32.gmra.mxu0 %v467
        %v469 = vpop.f32.mrf.mxu0
        %v470 = vadd.f32 %v399, %v469
        %471 = vdwg.mxu0
        %472 = vmatpush.msra.mxu0 0.0
        %473 = vmatpush.msra.mxu0 0.0
        %474 = vmatpush.msra.mxu0 0.0
        %475 = vmatpush.msra.mxu0 0.0
        %476 = vmatpush.msra.mxu0 0.0
        %477 = vmatpush.msra.mxu0 0.0
        %478 = vmatpush.msra.mxu0 0.0
        %479 = vmatpush.msra.mxu0 0.0
        %480 = vmatpush.msra.mxu0 0.0
        %481 = vmatpush.msra.mxu0 0.0
        %482 = vmatpush.msra.mxu0 0.0
        %483 = vmatpush.msra.mxu0 0.0
        %484 = vmatpush.msra.mxu0 0.0
        %485 = vmatpush.msra.mxu0 0.0
        %v486 = vand.u32 %v203, 4294901760
        %487 = vmatpush.msra.mxu0 %v486
        %v488 = vand.u32 %v202, 4294901760
        %489 = vmatpush.msra.mxu0 %v488
        %v490 = vand.u32 %v206, 4294901760
        %v491 = vsub.f32 %v206, %v490
        %v492 = vand.u32 %v491, 4294901760
        %493 = vmatmul.f32.gmra.mxu0 %v492
        %v494 = vpop.f32.mrf.mxu0
        %v495 = vadd.f32 %v425, %v494
        %v496 = vand.u32 %v209, 4294901760
        %v497 = vsub.f32 %v209, %v496
        %v498 = vand.u32 %v497, 4294901760
        %499 = vmatmul.f32.gmra.mxu0 %v498
        %v500 = vpop.f32.mrf.mxu0
        %v501 = vadd.f32 %v430, %v500
        %v502 = vand.u32 %v212, 4294901760
        %v503 = vsub.f32 %v212, %v502
        %v504 = vand.u32 %v503, 4294901760
        %505 = vmatmul.f32.gmra.mxu0 %v504
        %v506 = vpop.f32.mrf.mxu0
        %v507 = vadd.f32 %v435, %v506
        %v508 = vand.u32 %v215, 4294901760
        %v509 = vsub.f32 %v215, %v508
        %v510 = vand.u32 %v509, 4294901760
        %511 = vmatmul.f32.gmra.mxu0 %v510
        %v512 = vpop.f32.mrf.mxu0
        %v513 = vadd.f32 %v440, %v512
        %v514 = vand.u32 %v218, 4294901760
        %v515 = vsub.f32 %v218, %v514
        %v516 = vand.u32 %v515, 4294901760
        %517 = vmatmul.f32.gmra.mxu0 %v516
        %v518 = vpop.f32.mrf.mxu0
        %v519 = vadd.f32 %v445, %v518
        %v520 = vand.u32 %v221, 4294901760
        %v521 = vsub.f32 %v221, %v520
        %v522 = vand.u32 %v521, 4294901760
        %523 = vmatmul.f32.gmra.mxu0 %v522
        %v524 = vpop.f32.mrf.mxu0
        %v525 = vadd.f32 %v450, %v524
        %v526 = vand.u32 %v224, 4294901760
        %v527 = vsub.f32 %v224, %v526
        %v528 = vand.u32 %v527, 4294901760
        %529 = vmatmul.f32.gmra.mxu0 %v528
        %v530 = vpop.f32.mrf.mxu0
        %v531 = vadd.f32 %v455, %v530
        %v532 = vand.u32 %v227, 4294901760
        %v533 = vsub.f32 %v227, %v532
        %v534 = vand.u32 %v533, 4294901760
        %535 = vmatmul.f32.gmra.mxu0 %v534
        %v536 = vpop.f32.mrf.mxu0
        %v537 = vadd.f32 %v460, %v536
        %v538 = vand.u32 %v230, 4294901760
        %v539 = vsub.f32 %v230, %v538
        %v540 = vand.u32 %v539, 4294901760
        %541 = vmatmul.f32.gmra.mxu0 %v540
        %v542 = vpop.f32.mrf.mxu0
        %v543 = vadd.f32 %v465, %v542
        %v544 = vand.u32 %v233, 4294901760
        %v545 = vsub.f32 %v233, %v544
        %v546 = vand.u32 %v545, 4294901760
        %547 = vmatmul.f32.gmra.mxu0 %v546
        %v548 = vpop.f32.mrf.mxu0
        %v549 = vadd.f32 %v470, %v548
        %550 = vdwg.mxu0
        %551 = vmatpush.msra.mxu0 0.0
        %552 = vmatpush.msra.mxu0 0.0
        %553 = vmatpush.msra.mxu0 0.0
        %554 = vmatpush.msra.mxu0 0.0
        %555 = vmatpush.msra.mxu0 0.0
        %556 = vmatpush.msra.mxu0 0.0
        %557 = vmatpush.msra.mxu0 0.0
        %558 = vmatpush.msra.mxu0 0.0
        %559 = vmatpush.msra.mxu0 0.0
        %560 = vmatpush.msra.mxu0 0.0
        %561 = vmatpush.msra.mxu0 0.0
        %562 = vmatpush.msra.mxu0 0.0
        %563 = vmatpush.msra.mxu0 0.0
        %564 = vmatpush.msra.mxu0 0.0
        %v565 = vand.u32 %v203, 4294901760
        %v566 = vsub.f32 %v203, %v565
        %v567 = vand.u32 %v566, 4294901760
        %568 = vmatpush.msra.mxu0 %v567
        %v569 = vand.u32 %v202, 4294901760
        %v570 = vsub.f32 %v202, %v569
        %v571 = vand.u32 %v570, 4294901760
        %572 = vmatpush.msra.mxu0 %v571
        %v573 = vand.u32 %v206, 4294901760
        %574 = vmatmul.f32.gmra.mxu0 %v573
        %v575 = vpop.f32.mrf.mxu0
        %v576 = vadd.f32 %v495, %v575
        %v577 = vand.u32 %v209, 4294901760
        %578 = vmatmul.f32.gmra.mxu0 %v577
        %v579 = vpop.f32.mrf.mxu0
        %v580 = vadd.f32 %v501, %v579
        %v581 = vand.u32 %v212, 4294901760
        %582 = vmatmul.f32.gmra.mxu0 %v581
        %v583 = vpop.f32.mrf.mxu0
        %v584 = vadd.f32 %v507, %v583
        %v585 = vand.u32 %v215, 4294901760
        %586 = vmatmul.f32.gmra.mxu0 %v585
        %v587 = vpop.f32.mrf.mxu0
        %v588 = vadd.f32 %v513, %v587
        %v589 = vand.u32 %v218, 4294901760
        %590 = vmatmul.f32.gmra.mxu0 %v589
        %v591 = vpop.f32.mrf.mxu0
        %v592 = vadd.f32 %v519, %v591
        %v593 = vand.u32 %v221, 4294901760
        %594 = vmatmul.f32.gmra.mxu0 %v593
        %v595 = vpop.f32.mrf.mxu0
        %v596 = vadd.f32 %v525, %v595
        %v597 = vand.u32 %v224, 4294901760
        %598 = vmatmul.f32.gmra.mxu0 %v597
        %v599 = vpop.f32.mrf.mxu0
        %v600 = vadd.f32 %v531, %v599
        %v601 = vand.u32 %v227, 4294901760
        %602 = vmatmul.f32.gmra.mxu0 %v601
        %v603 = vpop.f32.mrf.mxu0
        %v604 = vadd.f32 %v537, %v603
        %v605 = vand.u32 %v230, 4294901760
        %606 = vmatmul.f32.gmra.mxu0 %v605
        %v607 = vpop.f32.mrf.mxu0
        %v608 = vadd.f32 %v543, %v607
        %v609 = vand.u32 %v233, 4294901760
        %610 = vmatmul.f32.gmra.mxu0 %v609
        %v611 = vpop.f32.mrf.mxu0
        %v612 = vadd.f32 %v549, %v611
        %613 = vdwg.mxu0
        %614 = vmatpush.msra.mxu0 0.0
        %615 = vmatpush.msra.mxu0 0.0
        %616 = vmatpush.msra.mxu0 0.0
        %617 = vmatpush.msra.mxu0 0.0
        %618 = vmatpush.msra.mxu0 0.0
        %619 = vmatpush.msra.mxu0 0.0
        %620 = vmatpush.msra.mxu0 0.0
        %621 = vmatpush.msra.mxu0 0.0
        %622 = vmatpush.msra.mxu0 0.0
        %623 = vmatpush.msra.mxu0 0.0
        %624 = vmatpush.msra.mxu0 0.0
        %625 = vmatpush.msra.mxu0 0.0
        %626 = vmatpush.msra.mxu0 0.0
        %627 = vmatpush.msra.mxu0 0.0
        %v628 = vand.u32 %v203, 4294901760
        %629 = vmatpush.msra.mxu0 %v628
        %v630 = vand.u32 %v202, 4294901760
        %631 = vmatpush.msra.mxu0 %v630
        %v632 = vand.u32 %v206, 4294901760
        %633 = vmatmul.f32.gmra.mxu0 %v632
        %v634 = vpop.f32.mrf.mxu0
        %v635 = vadd.f32 %v576, %v634
        %v636 = vand.u32 %v209, 4294901760
        %637 = vmatmul.f32.gmra.mxu0 %v636
        %v638 = vpop.f32.mrf.mxu0
        %v639 = vadd.f32 %v580, %v638
        %v640 = vand.u32 %v212, 4294901760
        %641 = vmatmul.f32.gmra.mxu0 %v640
        %v642 = vpop.f32.mrf.mxu0
        %v643 = vadd.f32 %v584, %v642
        %v644 = vand.u32 %v215, 4294901760
        %645 = vmatmul.f32.gmra.mxu0 %v644
        %v646 = vpop.f32.mrf.mxu0
        %v647 = vadd.f32 %v588, %v646
        %v648 = vand.u32 %v218, 4294901760
        %649 = vmatmul.f32.gmra.mxu0 %v648
        %v650 = vpop.f32.mrf.mxu0
        %v651 = vadd.f32 %v592, %v650
        %v652 = vand.u32 %v221, 4294901760
        %653 = vmatmul.f32.gmra.mxu0 %v652
        %v654 = vpop.f32.mrf.mxu0
        %v655 = vadd.f32 %v596, %v654
        %v656 = vand.u32 %v224, 4294901760
        %657 = vmatmul.f32.gmra.mxu0 %v656
        %v658 = vpop.f32.mrf.mxu0
        %v659 = vadd.f32 %v600, %v658
        %v660 = vand.u32 %v227, 4294901760
        %661 = vmatmul.f32.gmra.mxu0 %v660
        %v662 = vpop.f32.mrf.mxu0
        %v663 = vadd.f32 %v604, %v662
        %v664 = vand.u32 %v230, 4294901760
        %665 = vmatmul.f32.gmra.mxu0 %v664
        %v666 = vpop.f32.mrf.mxu0
        %v667 = vadd.f32 %v608, %v666
        %v668 = vand.u32 %v233, 4294901760
        %669 = vmatmul.f32.gmra.mxu0 %v668
        %v670 = vpop.f32.mrf.mxu0
        %v671 = vadd.f32 %v612, %v670
        %672 = vdwg.mxu0
        %v673 = vmul.f32 %v635, %v635
        %v674 = vmul.f32 %v639, %v639
        %v675 = vmul.f32 %v643, %v643
        %v676 = vmul.f32 %v647, %v647
        %v677 = vmul.f32 %v635, %v643
        %v678 = vmul.f32 %v639, %v647
        %v679 = vsub.f32 %v651, %v673
        %v680 = vsub.f32 %v655, %v674
        %v681 = vsub.f32 %v659, %v675
        %v682 = vsub.f32 %v663, %v676
        %v683 = vsub.f32 %v667, %v677
        %v684 = vsub.f32 %v671, %v678
        %v685 = vmul.f32 %v677, 2.0
        %v686 = vmul.f32 %v678, 2.0
        %v687 = vadd.f32 %v685, 0.0001
        %v688 = vadd.f32 %v686, 0.0001
        %v689 = vmul.f32 %v683, 2.0
        %v690 = vmul.f32 %v684, 2.0
        %v691 = vadd.f32 %v689, 0.0009
        %v692 = vadd.f32 %v690, 0.0009
        %v693 = vmul.f32 %v687, %v691
        %v694 = vmul.f32 %v688, %v692
        %v695 = vadd.f32 %v673, %v675
        %v696 = vadd.f32 %v674, %v676
        %v697 = vadd.f32 %v695, 0.0001
        %v698 = vadd.f32 %v696, 0.0001
        %v699 = vadd.f32 %v679, %v681
        %v700 = vadd.f32 %v680, %v682
        %v701 = vadd.f32 %v699, 0.0009
        %v702 = vadd.f32 %v700, 0.0009
        %v703 = vmul.f32 %v697, %v701
        %v704 = vmul.f32 %v698, %v702
        %v705 = vrcp.pop %v703
        %v706 = vrcp.pop %v704
        %v707 = vmul.f32 %v703, %v705
        %v708 = vmul.f32 %v704, %v706
        %v709 = vsub.f32 2.0, %v707
        %v710 = vsub.f32 2.0, %v708
        %v711 = vmul.f32 %v705, %v709
        %v712 = vmul.f32 %v706, %v710
        %v713 = vmul.f32 %v693, %v711
        %v714 = vmul.f32 %v694, %v712
        %v715 = vsel %vm204, %v713, 0.0
        %v716 = vsel %vm204, %v714, 0.0
        %v717 = vadd.f32 %v715, %v716
        %718 = vadd.xlane.f32.xlu0 %v717
        %v719 = vpop.xlane.xlu0 %718
        %v720 = vrot.slane %v719, 4
        %v721 = vadd.f32 %v719, %v720
        %v722 = vrot.slane %v721, 2
        %v723 = vadd.f32 %v721, %v722
        %v724 = vrot.slane %v723, 1
        %v725 = vadd.f32 %v723, %v724
        %s726 = vtos %v725
        %v727 = vstv %s726
        %728 = vst [vmem:[%s179] sm:$0x1] %v727
        %s729 = sand.u32 %s98, 1
        %s730 = scalar_lea.sflag [#allocation3], %s729
        %s731 = sand.u32 %s98, 1
        %s732 = scalar_lea.vmem [#allocation2], %s731
        // Predicated region
        $region33: #{tpu_custom_call.1} parent=31 // pred_check
          %p733 = pneg %p108
        $region34: #{tpu_custom_call.1} parent=31 // pred_check_branch
          %735 = sbr.rel (%p733) target = $region36
        $region35: #{tpu_custom_call.1} parent=31 // pred_region
          %737 = vsyncadd %s730, 0
          %s738 = scalar_lea.hbm %s3, %s17
          %s740 = sshll.u32 %s732, 4
          %s741 = int_to_ptr.vmem [resolvable:$true] %s740
          %s742 = sshll.u32 %s738, 4
          %s743 = int_to_ptr.hbm [resolvable:$true] %s742
          %745 = dma.vmem_to_hbm [thread:$0]  %s741, 16, %s743, %s730
        $region36: #{tpu_custom_call.1} parent=31 // pred_fallthru
          _
      $region32: #{tpu_custom_call.1} parent=5 // pred_fallthru
        _
      %p746 = scmp.le.s32.totalorder 2, %s12
      // Predicated region
      $region37: #{tpu_custom_call.1} parent=5 // pred_check
        %p747 = pneg %p746
      $region38: #{tpu_custom_call.1} parent=5 // pred_check_branch
        %749 = sbr.rel (%p747) target = $region40
      $region39: #{tpu_custom_call.1} parent=5 // pred_region
        %s750 = ssub.s32 %s12, 2
        // Predicated region
        $region41: #{tpu_custom_call.1} parent=39 // pred_check
          %p751 = pneg %p114
        $region42: #{tpu_custom_call.1} parent=39 // pred_check_branch
          %753 = sbr.rel (%p751) target = $region44
        $region43: #{tpu_custom_call.1} parent=39 // pred_region
          %s754 = sand.u32 %s99, 1
          %s755 = scalar_lea.sflag [#allocation3], %s754
          %s756 = sand.u32 %s99, 1
          %s757 = scalar_lea.vmem [#allocation2], %s756
          %759 = dma.done %s755, 16
        $region44: #{tpu_custom_call.1} parent=39 // pred_fallthru
          _
      $region40: #{tpu_custom_call.1} parent=5 // pred_fallthru
        _
    $region6: #{tpu_custom_call.1} parent=1 // loop_footer
      %s16 = sadd.s32 1, %s12
    $region7: #{tpu_custom_call.1} parent=1 // loop_footer_branch
      %11 = sbr.rel target = $region3
    $region8: #{tpu_custom_call.1} parent=1 // loop_exit
      _
    %760 = vsyncpa [#allocation3], 1
    %s761 = scalar_lea.sflag [#allocation3], 1
    %762 = vsyncpa %s761, 1

</llo_original>
